<compile_context>
chip_gen: v7x
topology: tpu7x:2x2x1
jax: 0.10.0
libtpu: 0.0.40
codegen_flags: <defaults>
</compile_context>

<pallas_src>
import jax
import jax.numpy as jnp
from jax.experimental import pallas as pl
from jax.experimental.pallas import tpu as pltpu

_LANE = 128        # vreg lane width
_BF16_SUBLANE = 16  # bf16 sublane-packed rows per vreg


def _round_up(x, m):
    return (x + m - 1) // m * m


def _vmem_capacity_bytes():
    try:
        return int(pltpu.get_tpu_info().vmem_capacity_bytes)
    except Exception:
        return 64 * 1024 * 1024  # conservative: v7x per-TensorCore VMEM


_VMEM_CAP_BYTES = _vmem_capacity_bytes()


def _pad_hidden(h):
    """Lane-pad the hidden width: 128 granularity (v5e MXU / min lane tile)
    while H <= 128, 256 granularity (full v6e/v7x MXU N width) beyond that."""
    return _round_up(h, 256) if h > 128 else _round_up(h, _LANE)


def _choose_batch_tile(B, F):
    """Batch tile: large enough to amortize the ~0.35us per-grid-step overhead
    (target ~4 MiB of streamed f32 x per step), MXU/sublane aligned, and split
    into >= 2 tiles whenever the batch allows (v7x megacore sharding)."""
    target_rows = (4 << 20) // max(4 * F, 1)
    tb = int(min(max(target_rows, 256), 4096))
    tb = _round_up(tb, 256)
    if B > 2 * _BF16_SUBLANE:
        # Never fewer than 2 batch tiles -> both v7x TensorCores get work.
        tb = min(tb, _round_up(pl.cdiv(B, 2), _BF16_SUBLANE))
    else:
        tb = min(tb, _round_up(B, _BF16_SUBLANE))
    return max(tb, _BF16_SUBLANE)


def _vmem_budget(tb, F, Hp, O, wbytes):
    """Honest VMEM estimate: double-buffered streamed blocks, 2x-counted
    resident weight/bias blocks (default buffering), plus the in-kernel
    f32 hidden activation and its bf16 copy for the second matmul."""
    return (2 * tb * F * 4                       # x tiles (f32, double-buffered)
            + 2 * tb * O * 4                     # out tiles (f32, double-buffered)
            + 2 * (F * Hp + Hp * O) * wbytes     # resident W1 / W2 (2x buffers)
            + 2 * (Hp + O) * 4                   # resident biases  (2x buffers)
            + tb * Hp * (4 + wbytes))            # f32 hidden + bf16 recast


def _net_kernel(x_ref, w1_ref, b1_ref, w2_ref, b2_ref, o_ref):
    # Cast x to bf16 in-kernel (VPU) so only f32 x is streamed from HBM once.
    x = x_ref[...].astype(w1_ref.dtype)
    # hidden linear: bf16 operands, f32 accumulate on the MXU.
    h = jnp.dot(x, w1_ref[...], preferred_element_type=jnp.float32)
    h = jnp.maximum(h + b1_ref[...], 0.0)        # bias + ReLU in f32 (VPU)
    # predict linear: bf16 operands, f32 accumulate; O-wide (unpadded) result.
    y = jnp.dot(h.astype(w2_ref.dtype), w2_ref[...],
                preferred_element_type=jnp.float32)
    o_ref[...] = (y + b2_ref[...]).astype(o_ref.dtype)


def pack_params(w1, b1, w2, b2, compute_dtype=jnp.bfloat16):
    """One-time glue (hoisted out of the forward call): transpose PyTorch
    (out, in) weights to (in, out), pad only the hidden lane dim, cast matmul
    operands to bf16, keep biases in f32.  Output dim O stays unpadded."""
    H, F = w1.shape
    O, H2 = w2.shape
    assert H2 == H, "forward only valid when n_hidden == n_feature (module quirk)"
    Hp = _pad_hidden(H)

    w1_t = jnp.zeros((F, Hp), compute_dtype).at[:, :H].set(
        w1.T.astype(compute_dtype))
    w2_t = jnp.zeros((Hp, O), compute_dtype).at[:H, :].set(
        w2.T.astype(compute_dtype))
    b1_p = jnp.zeros((1, Hp), jnp.float32).at[0, :H].set(b1.astype(jnp.float32))
    b2_p = b2.astype(jnp.float32).reshape(1, O)
    return (w1_t, b1_p, w2_t, b2_p)


@jax.jit
def net_forward(x, packed):
    """x: (B, F) float; packed: output of pack_params. Returns (B, O) f32."""
    w1_t, b1_p, w2_t, b2_p = packed
    F, Hp = w1_t.shape
    O = w2_t.shape[1]
    B = x.shape[0]
    assert x.shape[1] == F, "x feature dim must match hidden weight input dim"
    x = x.astype(jnp.float32)
    wbytes = jnp.dtype(w1_t.dtype).itemsize

    # Tile the batch; shrink the tile (not just the limit) if VMEM is tight.
    cap = (_VMEM_CAP_BYTES * 3) // 4            # leave headroom on every part
    TB = _choose_batch_tile(B, F)
    while _vmem_budget(TB, F, Hp, O, wbytes) > cap and TB > _BF16_SUBLANE:
        TB = max(_BF16_SUBLANE, _round_up(TB // 2, _BF16_SUBLANE))
    Bp = _round_up(B, TB)

    # Batch-pad only (no feature padding, no dtype conversion in the wrapper).
    x_in = x if Bp == B else jnp.pad(x, ((0, Bp - B), (0, 0)))

    budget = _vmem_budget(TB, F, Hp, O, wbytes)
    vmem_limit = int(min(max(int(1.5 * budget), 16 * 1024 * 1024), cap))

    out = pl.pallas_call(
        _net_kernel,
        out_shape=jax.ShapeDtypeStruct((Bp, O), jnp.float32),
        grid=(Bp // TB,),
        in_specs=[
            pl.BlockSpec((TB, F), lambda i: (i, 0)),    # x: tiled over batch, full F
            pl.BlockSpec((F, Hp), lambda i: (0, 0)),    # W1: resident in VMEM
            pl.BlockSpec((1, Hp), lambda i: (0, 0)),    # b1: resident
            pl.BlockSpec((Hp, O), lambda i: (0, 0)),    # W2: resident
            pl.BlockSpec((1, O), lambda i: (0, 0)),     # b2: resident
        ],
        out_specs=pl.BlockSpec((TB, O), lambda i: (i, 0)),  # unpadded O width
        compiler_params=pltpu.CompilerParams(
            dimension_semantics=("parallel",),          # independent batch tiles
            vmem_limit_bytes=vmem_limit,
        ),
    )(x_in, w1_t, b1_p, w2_t, b2_p)

    # Slice away batch padding only (output lane dim is already exact).
    return out[:B]


def _torch_linear_init(key, out_features, in_features, dtype=jnp.float32):
    """Deterministic re-implementation of torch.nn.Linear default init."""
    kw, kb = jax.random.split(key)
    bound = 1.0 / (in_features ** 0.5)
    w = jax.random.uniform(kw, (out_features, in_features), dtype, -bound, bound)
    b = jax.random.uniform(kb, (out_features,), dtype, -bound, bound)
    return w, b


if __name__ == "__main__":
    # Small shapes consistent with the module; n_hidden == n_feature so the
    # original forward is well-defined.
    B, n_feature, n_hidden, n_output = 8, 32, 32, 8

    key = jax.random.PRNGKey(0)
    k_x, k_h, k_p = jax.random.split(key, 3)

    x = jax.random.normal(k_x, (B, n_feature), jnp.float32)
    w1, b1 = _torch_linear_init(k_h, n_hidden, n_feature)   # self.hidden
    w2, b2 = _torch_linear_init(k_p, n_output, n_feature)   # self.predict

    packed = pack_params(w1, b1, w2, b2)                     # one-time packing
    y = net_forward(x, packed)
    y = jax.block_until_ready(y)

    # Reference check in plain JAX (same math as the PyTorch forward, f32).
    ref = jnp.maximum(x @ w1.T + b1, 0.0) @ w2.T + b2
    assert y.shape == (B, n_output)
    # bf16 matmul operands with f32 accumulation -> ~1e-2 class tolerance.
    assert jnp.allclose(y, ref, atol=2e-2, rtol=2e-2), \
        f"max abs err = {float(jnp.max(jnp.abs(y - ref)))}"

    print("KERNEL_OK")
</pallas_src>

<mosaic_0001>
module attributes {stable_mosaic.version = 11 : i64} {
  func.func @_net_kernel(%arg0: i32, %arg1: memref<16x32xf32, #tpu.memory_space<vmem>>, %arg2: memref<32x128xbf16, #tpu.memory_space<vmem>>, %arg3: memref<1x128xf32, #tpu.memory_space<vmem>>, %arg4: memref<128x8xbf16, #tpu.memory_space<vmem>>, %arg5: memref<1x8xf32, #tpu.memory_space<vmem>>, %arg6: memref<16x8xf32, #tpu.memory_space<vmem>>) attributes {dimension_semantics = [#tpu.dimension_semantics<parallel>], iteration_bounds = array<i64: 1>, scalar_prefetch = 0 : i64, scratch_operands = 0 : i64, tpu.core_type = #tpu.core_type<tc>, window_params = [{transform_indices = @transform_0, window_bounds = array<i64: 16, 32>}, {pipeline_mode = #tpu.pipeline_mode<synchronous>, transform_indices = @transform_1, window_bounds = array<i64: 32, 128>}, {pipeline_mode = #tpu.pipeline_mode<synchronous>, transform_indices = @transform_2, window_bounds = array<i64: 1, 128>}, {pipeline_mode = #tpu.pipeline_mode<synchronous>, transform_indices = @transform_3, window_bounds = array<i64: 128, 8>}, {pipeline_mode = #tpu.pipeline_mode<synchronous>, transform_indices = @transform_4, window_bounds = array<i64: 1, 8>}, {transform_indices = @transform_5, window_bounds = array<i64: 16, 8>}]} {
    %c0 = arith.constant 0 : index
    %c0_0 = arith.constant 0 : index
    %0 = vector.load %arg1[%c0, %c0_0] : memref<16x32xf32, #tpu.memory_space<vmem>>, vector<16x32xf32>
    %1 = arith.truncf %0 : vector<16x32xf32> to vector<16x32xbf16>
    %c0_1 = arith.constant 0 : index
    %c0_2 = arith.constant 0 : index
    %2 = vector.load %arg2[%c0_1, %c0_2] : memref<32x128xbf16, #tpu.memory_space<vmem>>, vector<32x128xbf16>
    %cst = arith.constant dense<0.000000e+00> : vector<16x128xf32>
    %3 = tpu.matmul %1, %2, %cst {dimension_numbers = #tpu.dot_dimension_numbers<[1], [0], [0], [1], [0, 0, 1, 1], [], []>} : vector<16x32xbf16>, vector<32x128xbf16>, vector<16x128xf32> -> vector<16x128xf32>
    %c0_3 = arith.constant 0 : index
    %c0_4 = arith.constant 0 : index
    %4 = vector.load %arg3[%c0_3, %c0_4] : memref<1x128xf32, #tpu.memory_space<vmem>>, vector<1x128xf32>
    %5 = vector.broadcast %4 : vector<1x128xf32> to vector<16x128xf32>
    %6 = arith.addf %3, %5 : vector<16x128xf32>
    %cst_5 = arith.constant 0.000000e+00 : f32
    %7 = vector.broadcast %cst_5 : f32 to vector<16x128xf32>
    %8 = arith.maximumf %6, %7 : vector<16x128xf32>
    %9 = arith.truncf %8 : vector<16x128xf32> to vector<16x128xbf16>
    %c0_6 = arith.constant 0 : index
    %c0_7 = arith.constant 0 : index
    %10 = vector.load %arg4[%c0_6, %c0_7] : memref<128x8xbf16, #tpu.memory_space<vmem>>, vector<128x8xbf16>
    %cst_8 = arith.constant dense<0.000000e+00> : vector<16x8xf32>
    %11 = tpu.matmul %9, %10, %cst_8 {dimension_numbers = #tpu.dot_dimension_numbers<[1], [0], [0], [1], [0, 0, 1, 1], [], []>} : vector<16x128xbf16>, vector<128x8xbf16>, vector<16x8xf32> -> vector<16x8xf32>
    %c0_9 = arith.constant 0 : index
    %c0_10 = arith.constant 0 : index
    %12 = vector.load %arg5[%c0_9, %c0_10] : memref<1x8xf32, #tpu.memory_space<vmem>>, vector<1x8xf32>
    %13 = vector.broadcast %12 : vector<1x8xf32> to vector<16x8xf32>
    %14 = arith.addf %11, %13 : vector<16x8xf32>
    %c0_11 = arith.constant 0 : index
    %c0_12 = arith.constant 0 : index
    %15 = vector.load %arg6[%c0_11, %c0_12] : memref<16x8xf32, #tpu.memory_space<vmem>>, vector<16x8xf32>
    tpu.vector_store %arg6[%c0_11, %c0_12], %14 {strides = array<i32>} : memref<16x8xf32, #tpu.memory_space<vmem>>, vector<16x8xf32>,
    return
  }
  func.func @transform_0(%arg0: i32) -> (i32, i32) {
    %c0_i32 = arith.constant 0 : i32
    %c0_i32_0 = arith.constant 0 : i32
    return %arg0, %c0_i32 : i32, i32
  }
  func.func @transform_1(%arg0: i32) -> (i32, i32) {
    %c0_i32 = arith.constant 0 : i32
    %c0_i32_0 = arith.constant 0 : i32
    %c0_i32_1 = arith.constant 0 : i32
    return %c0_i32, %c0_i32_0 : i32, i32
  }
  func.func @transform_2(%arg0: i32) -> (i32, i32) {
    %c0_i32 = arith.constant 0 : i32
    %c0_i32_0 = arith.constant 0 : i32
    %c0_i32_1 = arith.constant 0 : i32
    return %c0_i32, %c0_i32_0 : i32, i32
  }
  func.func @transform_3(%arg0: i32) -> (i32, i32) {
    %c0_i32 = arith.constant 0 : i32
    %c0_i32_0 = arith.constant 0 : i32
    %c0_i32_1 = arith.constant 0 : i32
    return %c0_i32, %c0_i32_0 : i32, i32
  }
  func.func @transform_4(%arg0: i32) -> (i32, i32) {
    %c0_i32 = arith.constant 0 : i32
    %c0_i32_0 = arith.constant 0 : i32
    %c0_i32_1 = arith.constant 0 : i32
    return %c0_i32, %c0_i32_0 : i32, i32
  }
  func.func @transform_5(%arg0: i32) -> (i32, i32) {
    %c0_i32 = arith.constant 0 : i32
    %c0_i32_0 = arith.constant 0 : i32
    return %arg0, %c0_i32 : i32, i32
  }
}

</mosaic_0001>

<llo_original>
// kernel: net_forward.1
$region0: #{net_forward.1}
  #allocation0 [shape = 'u32[]', space=smem, size = 0x4, offset = 0x4, fixed_abs, tag = 'smem constant byte address 0x4 - core index']
  #allocation1 [shape = 'u32[144,128]{1,0:T(1,128)}', space=vmem, size = 0x12000, scoped, tag = 'internal scratch']
  %s0 = inlined_call_operand.vmem [shape: f32[16,32], index: 0, kind: input, shape index: {}]
  %s1 = inlined_call_operand.vmem [shape: bf16[32,128], index: 1, kind: input, shape index: {}]
  %s2 = inlined_call_operand.vmem [shape: f32[1,128], index: 2, kind: input, shape index: {}]
  %s3 = inlined_call_operand.vmem [shape: bf16[128,8], index: 3, kind: input, shape index: {}]
  %s4 = inlined_call_operand.vmem [shape: f32[1,8], index: 4, kind: input, shape index: {}]
  %s5 = inlined_call_operand.vmem [shape: f32[16,8], index: 5, kind: output, shape index: {}]
  %s6 = sld [smem:[#allocation0]]
  $region30: #{net_forward.1} parent=0
    _
  %s8 = ssub.s32 1, %s6
  %s9 = scalar_select 0, %s8, %s6
  // Predicated region
  $region2: #{net_forward.1} parent=0 // pred_check
    _
  $region3: #{net_forward.1} parent=0 // pred_check_branch
    %11 = sbr.rel (0) target = $region5
  $region4: #{net_forward.1} parent=0 // pred_region
    _
  $region5: #{net_forward.1} parent=0 // pred_fallthru
    _
  // Predicated region
  $region6: #{net_forward.1} parent=0 // pred_check
    _
  $region7: #{net_forward.1} parent=0 // pred_check_branch
    %13 = sbr.rel (0) target = $region9
  $region8: #{net_forward.1} parent=0 // pred_region
    _
  $region9: #{net_forward.1} parent=0 // pred_fallthru
    _
  // Predicated region
  $region10: #{net_forward.1} parent=0 // pred_check
    _
  $region11: #{net_forward.1} parent=0 // pred_check_branch
    %15 = sbr.rel (0) target = $region13
  $region12: #{net_forward.1} parent=0 // pred_region
    _
  $region13: #{net_forward.1} parent=0 // pred_fallthru
    _
  // Predicated region
  $region14: #{net_forward.1} parent=0 // pred_check
    _
  $region15: #{net_forward.1} parent=0 // pred_check_branch
    %17 = sbr.rel (0) target = $region17
  $region16: #{net_forward.1} parent=0 // pred_region
    _
  $region17: #{net_forward.1} parent=0 // pred_fallthru
    _
  // Predicated region
  $region18: #{net_forward.1} parent=0 // pred_check
    _
  $region19: #{net_forward.1} parent=0 // pred_check_branch
    %19 = sbr.rel (0) target = $region21
  $region20: #{net_forward.1} parent=0 // pred_region
    _
  $region21: #{net_forward.1} parent=0 // pred_fallthru
    _
  %v21 = vld [vmem:[%s0] sm:$0xff]
  %v22 = vld [vmem:[%s0 + $0x8] sm:$0xff]
  %v23 = vpack.c.bf16 %v22, %v21
  %v24 = vld [vmem:[%s1] sm:$0xf]
  %v25 = vld [vmem:[%s1 + $0x4] sm:$0xf]
  %v26 = vld [vmem:[%s1 + $0x8] sm:$0xf]
  %v27 = vld [vmem:[%s1 + $0xc] sm:$0xf]
  %v28 = vld [vmem:[%s2] sm:$0x1]
  %v30 = vlaneseq
  %v31 = vshrl.u32 %v30, 7
  %v32 = vsub.s32 0, %v31
  %v33 = vrot.slane %v28, %v32
  %v39 = vunpack.c.l.b16 %v24
  %v40 = vunpack.c.l.b16 %v25
  %v41 = vunpack.c.l.b16 %v26
  %v42 = vunpack.c.l.b16 %v27
  %v43 = vpack.c.b16 %v40, %v39
  %v44 = vpack.c.b16 %v42, %v41
  %vm47 = vcmask 261120
  %v49 = vsel %vm47, %v23, 0
  %51 = vmatprep.subr.bf16.mxu0 0
  %52 = vmatpush1.bf16.msra.mxu0 %v43
  %53 = vmatprep.subr.bf16.mxu0 0
  %54 = vmatpush1.bf16.msra.mxu0 %v44
  %55 = vmatprep.subr.bf16.mxu0 0
  %56 = vmatpush1.bf16.msra.mxu0 0
  %57 = vmatprep.subr.bf16.mxu0 0
  %58 = vmatpush1.bf16.msra.mxu0 0
  %59 = vmatprep.subr.bf16.mxu0 0
  %60 = vmatpush1.bf16.msra.mxu0 0
  %61 = vmatprep.subr.bf16.mxu0 0
  %62 = vmatpush1.bf16.msra.mxu0 0
  %63 = vmatprep.subr.bf16.mxu0 0
  %64 = vmatpush1.bf16.msra.mxu0 0
  %65 = vmatprep.subr.bf16.mxu0 0
  %66 = vmatpush1.bf16.msra.mxu0 0
  %67 = vmatprep.subr.bf16.mxu0 0
  %68 = vmatpush1.bf16.msra.mxu0 0
  %69 = vmatprep.subr.bf16.mxu0 0
  %70 = vmatpush1.bf16.msra.mxu0 0
  %71 = vmatprep.subr.bf16.mxu0 0
  %72 = vmatpush1.bf16.msra.mxu0 0
  %73 = vmatprep.subr.bf16.mxu0 0
  %74 = vmatpush1.bf16.msra.mxu0 0
  %75 = vmatprep.subr.bf16.mxu0 0
  %76 = vmatpush1.bf16.msra.mxu0 0
  %77 = vmatprep.subr.bf16.mxu0 0
  %78 = vmatpush1.bf16.msra.mxu0 0
  %79 = vmatprep.subr.bf16.mxu0 0
  %80 = vmatpush1.bf16.msra.mxu0 0
  %81 = vmatprep.subr.bf16.mxu0 0
  %82 = vmatpush1.bf16.msra.mxu0 0
  %83 = vmatprep.mubr.bf16.mxu0 0
  %84 = vmatmul.mubr.bf16.gmra.mrb[0].mxu0 %v49
  %v85 = vpop.f32.mrb[0].mxu0
  %v86 = vadd.f32 %v33, %v85
  %v87 = vpop.f32.mrb[0].mxu0
  %v88 = vpop.f32.mrb[0].mxu0
  %v89 = vadd.f32 %v33, %v88
  %v90 = vpop.f32.mrb[0].mxu0
  %91 = vdwg.mxu0
  %v92 = vmax.f32 %v86, 0.0
  %v93 = vmax.f32 %v89, 0.0
  %v94 = vpack.c.bf16 %v93, %v92
  %v95 = vld [vmem:[%s3] sm:$0xf]
  %v96 = vld [vmem:[%s3 + $0x4] sm:$0xf]
  %v97 = vld [vmem:[%s3 + $0x8] sm:$0xf]
  %v98 = vld [vmem:[%s3 + $0xc] sm:$0xf]
  %v99 = vld [vmem:[%s3 + $0x10] sm:$0xf]
  %v100 = vld [vmem:[%s3 + $0x14] sm:$0xf]
  %v101 = vld [vmem:[%s3 + $0x18] sm:$0xf]
  %v102 = vld [vmem:[%s3 + $0x1c] sm:$0xf]
  %v103 = vld [vmem:[%s3 + $0x20] sm:$0xf]
  %v104 = vld [vmem:[%s3 + $0x24] sm:$0xf]
  %v105 = vld [vmem:[%s3 + $0x28] sm:$0xf]
  %v106 = vld [vmem:[%s3 + $0x2c] sm:$0xf]
  %v107 = vld [vmem:[%s3 + $0x30] sm:$0xf]
  %v108 = vld [vmem:[%s3 + $0x34] sm:$0xf]
  %v109 = vld [vmem:[%s3 + $0x38] sm:$0xf]
  %v110 = vld [vmem:[%s3 + $0x3c] sm:$0xf]
  %v111 = vld [vmem:[%s4] sm:$0x1]
  %v113 = vlaneseq
  %v114 = vshrl.u32 %v113, 7
  %v115 = vsub.s32 0, %v114
  %v116 = vrot.slane %v111, %v115
  %v134 = vunpack.c.l.b16 %v95
  %v135 = vunpack.c.l.b16 %v96
  %v136 = vunpack.c.l.b16 %v97
  %v137 = vunpack.c.l.b16 %v98
  %v138 = vunpack.c.l.b16 %v99
  %v139 = vunpack.c.l.b16 %v100
  %v140 = vunpack.c.l.b16 %v101
  %v141 = vunpack.c.l.b16 %v102
  %v142 = vunpack.c.l.b16 %v103
  %v143 = vunpack.c.l.b16 %v104
  %v144 = vunpack.c.l.b16 %v105
  %v145 = vunpack.c.l.b16 %v106
  %v146 = vunpack.c.l.b16 %v107
  %v147 = vunpack.c.l.b16 %v108
  %v148 = vunpack.c.l.b16 %v109
  %v149 = vunpack.c.l.b16 %v110
  %v150 = vpack.c.b16 %v135, %v134
  %v151 = vpack.c.b16 %v137, %v136
  %v152 = vpack.c.b16 %v139, %v138
  %v153 = vpack.c.b16 %v141, %v140
  %v154 = vpack.c.b16 %v143, %v142
  %v155 = vpack.c.b16 %v145, %v144
  %v156 = vpack.c.b16 %v147, %v146
  %v157 = vpack.c.b16 %v149, %v148
  %166 = vmatprep.subr.bf16.mxu0 0
  %167 = vmatpush1.bf16.msra.mxu0 %v150
  %168 = vmatprep.subr.bf16.mxu0 0
  %169 = vmatpush1.bf16.msra.mxu0 %v151
  %170 = vmatprep.subr.bf16.mxu0 0
  %171 = vmatpush1.bf16.msra.mxu0 %v152
  %172 = vmatprep.subr.bf16.mxu0 0
  %173 = vmatpush1.bf16.msra.mxu0 %v153
  %174 = vmatprep.subr.bf16.mxu0 0
  %175 = vmatpush1.bf16.msra.mxu0 %v154
  %176 = vmatprep.subr.bf16.mxu0 0
  %177 = vmatpush1.bf16.msra.mxu0 %v155
  %178 = vmatprep.subr.bf16.mxu0 0
  %179 = vmatpush1.bf16.msra.mxu0 %v156
  %180 = vmatprep.subr.bf16.mxu0 0
  %181 = vmatpush1.bf16.msra.mxu0 %v157
  %182 = vmatprep.subr.bf16.mxu0 0
  %183 = vmatpush1.bf16.msra.mxu0 0
  %184 = vmatprep.subr.bf16.mxu0 0
  %185 = vmatpush1.bf16.msra.mxu0 0
  %186 = vmatprep.subr.bf16.mxu0 0
  %187 = vmatpush1.bf16.msra.mxu0 0
  %188 = vmatprep.subr.bf16.mxu0 0
  %189 = vmatpush1.bf16.msra.mxu0 0
  %190 = vmatprep.subr.bf16.mxu0 0
  %191 = vmatpush1.bf16.msra.mxu0 0
  %192 = vmatprep.subr.bf16.mxu0 0
  %193 = vmatpush1.bf16.msra.mxu0 0
  %194 = vmatprep.subr.bf16.mxu0 0
  %195 = vmatpush1.bf16.msra.mxu0 0
  %196 = vmatprep.subr.bf16.mxu0 0
  %197 = vmatpush1.bf16.msra.mxu0 0
  %198 = vmatprep.mubr.bf16.mxu0 0
  %199 = vmatmul.mubr.bf16.gmra.mrb[0].mxu0 %v94
  %v200 = vpop.f32.mrb[0].mxu0
  %v201 = vadd.f32 %v116, %v200
  %v202 = vpop.f32.mrb[0].mxu0
  %v203 = vpop.f32.mrb[0].mxu0
  %v204 = vadd.f32 %v116, %v203
  %v205 = vpop.f32.mrb[0].mxu0
  %206 = vdwg.mxu0
  %vm207 = vcmask 64512
  %208 = vst.msk [vmem:[%s5] sm:$0xff] %vm207, %v201
  %209 = vst.msk [vmem:[%s5 + $0x8] sm:$0xff] %vm207, %v204
  // Predicated region
  $region22: #{net_forward.1} parent=0 // pred_check
    _
  $region23: #{net_forward.1} parent=0 // pred_check_branch
    %211 = sbr.rel (0) target = $region25
  $region24: #{net_forward.1} parent=0 // pred_region
    _
  $region25: #{net_forward.1} parent=0 // pred_fallthru
    _
  // Predicated region
  $region26: #{net_forward.1} parent=0 // pred_check
    _
  $region27: #{net_forward.1} parent=0 // pred_check_branch
    %213 = sbr.rel (0) target = $region29
  $region28: #{net_forward.1} parent=0 // pred_region
    _
  $region29: #{net_forward.1} parent=0 // pred_fallthru
    _

</llo_original>
